<compile_context>
chip_gen: v6e
topology: v6e:2x2x1
jax: 0.10.0
libtpu: 0.0.40
codegen_flags: <defaults>
</compile_context>

<pallas_src>
import jax
import jax.numpy as jnp
from jax.experimental import pallas as pl
from jax.experimental.pallas import tpu as pltpu


def _round_up(a: int, b: int) -> int:
    return -(-a // b) * b


def _conv_mm_kernel(p_ref, w_ref, b_ref, o_ref, acc_ref):
    """im2col matmul with K-axis accumulation (P3) and bias add at finalize."""
    k = pl.program_id(1)

    @pl.when(k == 0)
    def _():
        acc_ref[...] = jnp.zeros_like(acc_ref)

    acc_ref[...] += jnp.dot(p_ref[...], w_ref[...],
                            preferred_element_type=jnp.float32)  # MXU

    @pl.when(k == pl.num_programs(1) - 1)
    def _():
        o_ref[...] = (acc_ref[...] + b_ref[...]).astype(o_ref.dtype)


def fake_int_multiprec_conv2d(x, weight, bias, alpha_weight, bits, s_w, *,
                              stride=(1, 1), padding=(1, 1), dilation=(1, 1),
                              groups=1, compute_dtype=None):
    """Forward of FakeIntMultiPrecConv2d. NCHW activations, OIHW weights."""
    assert groups == 1, "TODO(synk): grouped conv not supported in the Pallas path"
    N, Cin, H, W = x.shape
    Cout, Cin_w, KH, KW = weight.shape
    assert Cin_w == Cin
    sh, sw_ = stride
    ph, pw = padding
    dh, dw = dilation
    OH = (H + 2 * ph - dh * (KH - 1) - 1) // sh + 1
    OW = (W + 2 * pw - dw * (KW - 1) - 1) // sw_ + 1

    f32 = jnp.float32
    if compute_dtype is None:
        compute_dtype = x.dtype          # MXU operand dtype (bf16 recommended)
    out_dtype = x.dtype

    # ---- per-out-channel fake-quantized weight (hoisted out of the kernel) ----
    steps = jnp.asarray([float(s_w[b]) for b in bits], f32)              # (nbits,)
    qmaxs = jnp.asarray([float(2 ** (b - 1) - 1) for b in bits], f32)    # (nbits,)
    sel = jnp.argmax(alpha_weight, axis=0)                               # (Cout,)
    step_c = steps[sel][None, :]                                         # (1, Cout)
    qmax_c = qmaxs[sel][None, :]

    K = Cin * KH * KW
    w2d = weight.reshape(Cout, K).T.astype(f32)                          # (K, Cout)
    # multiply by 1/step instead of dividing (and it's out of the hot loop now)
    wq = jnp.clip(jnp.round(w2d * (1.0 / step_c)), -qmax_c, qmax_c) * step_c

    # mix_quant_bias = sum_i bias * sw[i] == bias (one-hot columns sum to 1).
    b1 = jnp.zeros((Cout,), f32) if bias is None else bias.astype(f32)

    # ---- pad Cout to a lane-dense multiple of 128 ----
    Cout_pad = _round_up(Cout, 128)
    if Cout_pad != Cout:
        wq = jnp.pad(wq, ((0, 0), (0, Cout_pad - Cout)))
    b2d = jnp.zeros((1, Cout_pad), f32).at[:, :Cout].set(b1[None, :])
    wq = wq.astype(compute_dtype)

    # ---- im2col (pure data movement; left to XLA) ----
    xp = jnp.pad(x, ((0, 0), (0, 0), (ph, ph), (pw, pw))).astype(compute_dtype)
    cols = []
    for i in range(KH):
        for j in range(KW):
            h0, w0 = i * dh, j * dw
            cols.append(xp[:, :, h0:h0 + (OH - 1) * sh + 1:sh,
                               w0:w0 + (OW - 1) * sw_ + 1:sw_])
    # Feature order (Cin, KH, KW) matches weight.reshape(Cout, Cin*KH*KW).
    patches = jnp.stack(cols, axis=2).reshape(N, K, OH, OW)
    patches = patches.transpose(0, 2, 3, 1).reshape(N * OH * OW, K)
    M = N * OH * OW

    # ---- VMEM-budget-driven tile selection (v5e/v6e 128 MiB, v7x 64 MiB) ----
    esz = jnp.dtype(compute_dtype).itemsize
    osz = jnp.dtype(out_dtype).itemsize
    try:
        vmem_cap = int(pltpu.get_tpu_info().vmem_capacity_bytes)
    except Exception:
        vmem_cap = 64 * 1024 * 1024                  # conservative (v7x per-TC)
    vmem_limit = min(vmem_cap // 2, 100 * 1024 * 1024)
    budget = int(0.75 * vmem_limit)                  # headroom for compiler scratch

    def tm_cap_for(tk_):
        # double-buffered patches/outputs, double-buffered resident weight,
        # f32 accumulator scratch, (negligible) bias.
        fixed = 2 * tk_ * Cout_pad * esz + 2 * Cout_pad * 4
        per_row = 2 * tk_ * esz + 2 * Cout_pad * osz + Cout_pad * 4
        return max((budget - fixed) // per_row, 0)

    target_tm = min(256, _round_up(M, 8))
    tk, k_tiles = K, 1
    if tm_cap_for(K) < max(8, target_tm):
        # K too large to ride whole in every patch block: tile the reduction.
        tk = 1024
        while tk > 128 and tm_cap_for(tk) < max(8, target_tm):
            tk //= 2
        k_tiles = pl.cdiv(K, tk)

    K_pad = tk * k_tiles
    if K_pad != K:
        # Zero-pad BOTH operands along K so a ragged reduction tile can never
        # pull garbage (NaN * 0 == NaN) into valid output rows.
        patches = jnp.pad(patches, ((0, 0), (0, K_pad - K)))
        wq = jnp.pad(wq, ((0, K_pad - K), (0, 0)))

    tm = min(tm_cap_for(tk), 1024, _round_up(M, 8))
    if tm >= 256:
        tm = (tm // 256) * 256        # MXU-friendly M tiles on v6e/v7x
    else:
        tm = max((tm // 8) * 8, 8)
    m_tiles = pl.cdiv(M, tm)          # ragged last tile; no M-direction pad

    out2d = pl.pallas_call(
        _conv_mm_kernel,
        out_shape=jax.ShapeDtypeStruct((M, Cout_pad), out_dtype),
        grid_spec=pltpu.PrefetchScalarGridSpec(
            num_scalar_prefetch=0,
            grid=(m_tiles, k_tiles),
            in_specs=[
                pl.BlockSpec((tm, tk), lambda i, k: (i, k)),         # patch tile
                pl.BlockSpec((tk, Cout_pad), lambda i, k: (k, 0)),   # quantized weight
                pl.BlockSpec((1, Cout_pad), lambda i, k: (0, 0)),    # bias (resident)
            ],
            out_specs=pl.BlockSpec((tm, Cout_pad), lambda i, k: (i, 0)),
            scratch_shapes=[pltpu.VMEM((tm, Cout_pad), jnp.float32)],
        ),
        compiler_params=pltpu.CompilerParams(
            dimension_semantics=("parallel", "arbitrary"),
            vmem_limit_bytes=vmem_limit,
        ),
    )(patches, wq, b2d)

    out = out2d[:, :Cout]
    return out.reshape(N, OH, OW, Cout).transpose(0, 3, 1, 2)


if __name__ == "__main__":
    key = jax.random.PRNGKey(0)
    kx, kw, ka, kb = jax.random.split(key, 4)

    # Small shapes consistent with the module: NCHW activations, OIHW weights.
    N, Cin, H, W = 2, 4, 16, 16
    Cout, KH, KW = 8, 3, 3
    bits = (2, 4, 8)
    # Power-of-two steps (exactly representable) keep the numeric check tight.
    s_w = {2: 2.0 ** -4, 4: 2.0 ** -5, 8: 2.0 ** -7}

    # Activations on a 1/8 grid in [-2, 2]; together with power-of-two quant
    # steps and <=8-bit integer weight levels, every MXU operand is exactly
    # representable in bf16 -> the bf16 MXU path matches the f32 reference.
    x = jnp.round(jax.random.uniform(kx, (N, Cin, H, W), jnp.float32,
                                     minval=-2.0, maxval=2.0) * 8.0) / 8.0
    weight = jax.random.normal(kw, (Cout, Cin, KH, KW), jnp.float32) * 0.1
    alpha = jax.random.uniform(ka, (len(bits), Cout), jnp.float32)
    bias = jax.random.normal(kb, (Cout,), jnp.float32) * 0.1

    out = fake_int_multiprec_conv2d(x, weight, bias, alpha, bits, s_w,
                                    stride=(1, 1), padding=(1, 1),
                                    dilation=(1, 1), groups=1,
                                    compute_dtype=jnp.bfloat16)
    jax.block_until_ready(out)

    # Pure-JAX f32 reference (same semantics as the PyTorch forward).
    steps = jnp.asarray([s_w[b] for b in bits], jnp.float32)
    qmaxs = jnp.asarray([2.0 ** (b - 1) - 1.0 for b in bits], jnp.float32)
    sel = jnp.argmax(alpha, axis=0)
    step_c = steps[sel][:, None, None, None]
    qmax_c = qmaxs[sel][:, None, None, None]
    wq = jnp.clip(jnp.round(weight / step_c), -qmax_c, qmax_c) * step_c
    ref = jax.lax.conv_general_dilated(
        x, wq, window_strides=(1, 1), padding=((1, 1), (1, 1)),
        lhs_dilation=(1, 1), rhs_dilation=(1, 1),
        dimension_numbers=("NCHW", "OIHW", "NCHW"))
    ref = ref + bias[None, :, None, None]

    assert out.shape == ref.shape, (out.shape, ref.shape)
    err = float(jnp.max(jnp.abs(out - ref)))
    assert err <= 1e-4, err
    print("KERNEL_OK")
</pallas_src>

<mosaic_0001>
module attributes {stable_mosaic.version = 11 : i64} {
  func.func @_conv_mm_kernel(%arg0: i32, %arg1: i32, %arg2: memref<512x36xbf16, #tpu.memory_space<vmem>>, %arg3: memref<36x128xbf16, #tpu.memory_space<vmem>>, %arg4: memref<1x128xf32, #tpu.memory_space<vmem>>, %arg5: memref<512x128xf32, #tpu.memory_space<vmem>>, %arg6: memref<512x128xf32, #tpu.memory_space<vmem>>) attributes {dimension_semantics = [#tpu.dimension_semantics<parallel>, #tpu.dimension_semantics<arbitrary>], iteration_bounds = array<i64: 1, 1>, scalar_prefetch = 0 : i64, scratch_operands = 1 : i64, tpu.core_type = #tpu.core_type<tc>, window_params = [{transform_indices = @transform_0, window_bounds = array<i64: 512, 36>}, {transform_indices = @transform_1, window_bounds = array<i64: 36, 128>}, {pipeline_mode = #tpu.pipeline_mode<synchronous>, transform_indices = @transform_2, window_bounds = array<i64: 1, 128>}, {transform_indices = @transform_3, window_bounds = array<i64: 512, 128>}]} {
    %c0_i32 = arith.constant 0 : i32
    %0 = arith.cmpi eq, %arg1, %c0_i32 : i32
    %1 = arith.extui %0 : i1 to i32
    %c0_i32_0 = arith.constant 0 : i32
    %2 = arith.cmpi ne, %1, %c0_i32_0 : i32
    scf.if %2 {
      %cst_10 = arith.constant 0.000000e+00 : f32
      %12 = vector.broadcast %cst_10 : f32 to vector<512x128xf32>
      %c0_11 = arith.constant 0 : index
      %c0_12 = arith.constant 0 : index
      %13 = vector.load %arg6[%c0_11, %c0_12] : memref<512x128xf32, #tpu.memory_space<vmem>>, vector<512x128xf32>
      tpu.vector_store %arg6[%c0_11, %c0_12], %12 {strides = array<i32>} : memref<512x128xf32, #tpu.memory_space<vmem>>, vector<512x128xf32>,
    } else {
    }
    %c0 = arith.constant 0 : index
    %c0_1 = arith.constant 0 : index
    %3 = vector.load %arg6[%c0, %c0_1] : memref<512x128xf32, #tpu.memory_space<vmem>>, vector<512x128xf32>
    %c0_2 = arith.constant 0 : index
    %c0_3 = arith.constant 0 : index
    %4 = vector.load %arg2[%c0_2, %c0_3] : memref<512x36xbf16, #tpu.memory_space<vmem>>, vector<512x36xbf16>
    %c0_4 = arith.constant 0 : index
    %c0_5 = arith.constant 0 : index
    %5 = vector.load %arg3[%c0_4, %c0_5] : memref<36x128xbf16, #tpu.memory_space<vmem>>, vector<36x128xbf16>
    %cst = arith.constant dense<0.000000e+00> : vector<512x128xf32>
    %6 = tpu.matmul %4, %5, %cst {dimension_numbers = #tpu.dot_dimension_numbers<[1], [0], [0], [1], [0, 0, 1, 1], [], []>} : vector<512x36xbf16>, vector<36x128xbf16>, vector<512x128xf32> -> vector<512x128xf32>
    %7 = arith.addf %3, %6 : vector<512x128xf32>
    %c0_6 = arith.constant 0 : index
    %c0_7 = arith.constant 0 : index
    %8 = vector.load %arg6[%c0_6, %c0_7] : memref<512x128xf32, #tpu.memory_space<vmem>>, vector<512x128xf32>
    tpu.vector_store %arg6[%c0_6, %c0_7], %7 {strides = array<i32>} : memref<512x128xf32, #tpu.memory_space<vmem>>, vector<512x128xf32>,
    %c0_i32_8 = arith.constant 0 : i32
    %9 = arith.cmpi eq, %arg1, %c0_i32_8 : i32
    %10 = arith.extui %9 : i1 to i32
    %c0_i32_9 = arith.constant 0 : i32
    %11 = arith.cmpi ne, %10, %c0_i32_9 : i32
    scf.if %11 {
      %c0_10 = arith.constant 0 : index
      %c0_11 = arith.constant 0 : index
      %12 = vector.load %arg6[%c0_10, %c0_11] : memref<512x128xf32, #tpu.memory_space<vmem>>, vector<512x128xf32>
      %c0_12 = arith.constant 0 : index
      %c0_13 = arith.constant 0 : index
      %13 = vector.load %arg4[%c0_12, %c0_13] : memref<1x128xf32, #tpu.memory_space<vmem>>, vector<1x128xf32>
      %14 = vector.broadcast %13 : vector<1x128xf32> to vector<512x128xf32>
      %15 = arith.addf %12, %14 : vector<512x128xf32>
      %c0_14 = arith.constant 0 : index
      %c0_15 = arith.constant 0 : index
      %16 = vector.load %arg5[%c0_14, %c0_15] : memref<512x128xf32, #tpu.memory_space<vmem>>, vector<512x128xf32>
      tpu.vector_store %arg5[%c0_14, %c0_15], %15 {strides = array<i32>} : memref<512x128xf32, #tpu.memory_space<vmem>>, vector<512x128xf32>,
    } else {
    }
    return
  }
  func.func @transform_0(%arg0: i32, %arg1: i32) -> (i32, i32) {
    %c0_i32 = arith.constant 0 : i32
    return %arg0, %arg1 : i32, i32
  }
  func.func @transform_1(%arg0: i32, %arg1: i32) -> (i32, i32) {
    %c0_i32 = arith.constant 0 : i32
    %c0_i32_0 = arith.constant 0 : i32
    return %arg1, %c0_i32 : i32, i32
  }
  func.func @transform_2(%arg0: i32, %arg1: i32) -> (i32, i32) {
    %c0_i32 = arith.constant 0 : i32
    %c0_i32_0 = arith.constant 0 : i32
    %c0_i32_1 = arith.constant 0 : i32
    return %c0_i32, %c0_i32_0 : i32, i32
  }
  func.func @transform_3(%arg0: i32, %arg1: i32) -> (i32, i32) {
    %c0_i32 = arith.constant 0 : i32
    %c0_i32_0 = arith.constant 0 : i32
    return %arg0, %c0_i32 : i32, i32
  }
}

</mosaic_0001>

<llo_original>
// kernel: tpu_custom_call.1
$region0: #{tpu_custom_call.1}
  #allocation0 [shape = 'u32[]', space=smem, size = 0x4, offset = 0x4, fixed_abs, tag = 'smem constant byte address 0x4 - core index']
  #allocation1 [shape = 'u32[144,128]{1,0:T(1,128)}', space=vmem, size = 0x12000, scoped, tag = 'internal scratch']
  #allocation2 [shape = 'f32[512,128]{1,0:T(8,128)}', space=vmem, size = 0x40000, scoped, tag = 'scratch operand']
  %s0 = inlined_call_operand.vmem [shape: bf16[512,36], index: 0, kind: input, shape index: {}]
  %s1 = inlined_call_operand.vmem [shape: bf16[36,128], index: 1, kind: input, shape index: {}]
  %s2 = inlined_call_operand.vmem [shape: f32[1,128], index: 2, kind: input, shape index: {}]
  %s3 = inlined_call_operand.hbm [shape: f32[512,128], index: 3, kind: output, shape index: {}]
  %s4 = sld [smem:[#allocation0]]
  $region30: #{tpu_custom_call.1} parent=0
    _
  %s6 = ssub.s32 1, %s4
  %s7 = scalar_select 0, %s6, %s4
  $region1: #{tpu_custom_call.1} parent=0
    #allocation3 [shape = 'u8[262144]{0}', space=vmem, size = 0x40000, scoped, tag = 'output window, operand 0, single buffered']
    #allocation4 [shape = 's32[1]{0}', space=sflag, size = 0x4, scoped, tag = 'scoped memory for tpu_custom_call.1']
    %8 = vsyncpa [#allocation4], 0
    // Predicated region
    $region2: #{tpu_custom_call.1} parent=1 // pred_check
      _
    $region3: #{tpu_custom_call.1} parent=1 // pred_check_branch
      %10 = sbr.rel (0) target = $region5
    $region4: #{tpu_custom_call.1} parent=1 // pred_region
      _
    $region5: #{tpu_custom_call.1} parent=1 // pred_fallthru
      _
    // Predicated region
    $region6: #{tpu_custom_call.1} parent=1 // pred_check
      _
    $region7: #{tpu_custom_call.1} parent=1 // pred_check_branch
      %12 = sbr.rel (0) target = $region9
    $region8: #{tpu_custom_call.1} parent=1 // pred_region
      _
    $region9: #{tpu_custom_call.1} parent=1 // pred_fallthru
      _
    // Predicated region
    $region10: #{tpu_custom_call.1} parent=1 // pred_check
      _
    $region11: #{tpu_custom_call.1} parent=1 // pred_check_branch
      %14 = sbr.rel (0) target = $region13
    $region12: #{tpu_custom_call.1} parent=1 // pred_region
      _
    $region13: #{tpu_custom_call.1} parent=1 // pred_fallthru
      _
    %p16 = scmp.eq.s32.totalorder 0, 0
    // Predicated region
    $region14: #{tpu_custom_call.1} parent=1 // pred_check
      %p17 = pneg %p16
    $region15: #{tpu_custom_call.1} parent=1 // pred_check_branch
      %19 = sbr.rel (%p17) target = $region17
    $region16: #{tpu_custom_call.1} parent=1 // pred_region
      %20 = vst [vmem:[#allocation2] sm:$0xff] 0.0
      %21 = vst [vmem:[#allocation2 + $0x8] sm:$0xff] 0.0
      %22 = vst [vmem:[#allocation2 + $0x10] sm:$0xff] 0.0
      %23 = vst [vmem:[#allocation2 + $0x18] sm:$0xff] 0.0
      %24 = vst [vmem:[#allocation2 + $0x20] sm:$0xff] 0.0
      %25 = vst [vmem:[#allocation2 + $0x28] sm:$0xff] 0.0
      %26 = vst [vmem:[#allocation2 + $0x30] sm:$0xff] 0.0
      %27 = vst [vmem:[#allocation2 + $0x38] sm:$0xff] 0.0
      %28 = vst [vmem:[#allocation2 + $0x40] sm:$0xff] 0.0
      %29 = vst [vmem:[#allocation2 + $0x48] sm:$0xff] 0.0
      %30 = vst [vmem:[#allocation2 + $0x50] sm:$0xff] 0.0
      %31 = vst [vmem:[#allocation2 + $0x58] sm:$0xff] 0.0
      %32 = vst [vmem:[#allocation2 + $0x60] sm:$0xff] 0.0
      %33 = vst [vmem:[#allocation2 + $0x68] sm:$0xff] 0.0
      %34 = vst [vmem:[#allocation2 + $0x70] sm:$0xff] 0.0
      %35 = vst [vmem:[#allocation2 + $0x78] sm:$0xff] 0.0
      %36 = vst [vmem:[#allocation2 + $0x80] sm:$0xff] 0.0
      %37 = vst [vmem:[#allocation2 + $0x88] sm:$0xff] 0.0
      %38 = vst [vmem:[#allocation2 + $0x90] sm:$0xff] 0.0
      %39 = vst [vmem:[#allocation2 + $0x98] sm:$0xff] 0.0
      %40 = vst [vmem:[#allocation2 + $0xa0] sm:$0xff] 0.0
      %41 = vst [vmem:[#allocation2 + $0xa8] sm:$0xff] 0.0
      %42 = vst [vmem:[#allocation2 + $0xb0] sm:$0xff] 0.0
      %43 = vst [vmem:[#allocation2 + $0xb8] sm:$0xff] 0.0
      %44 = vst [vmem:[#allocation2 + $0xc0] sm:$0xff] 0.0
      %45 = vst [vmem:[#allocation2 + $0xc8] sm:$0xff] 0.0
      %46 = vst [vmem:[#allocation2 + $0xd0] sm:$0xff] 0.0
      %47 = vst [vmem:[#allocation2 + $0xd8] sm:$0xff] 0.0
      %48 = vst [vmem:[#allocation2 + $0xe0] sm:$0xff] 0.0
      %49 = vst [vmem:[#allocation2 + $0xe8] sm:$0xff] 0.0
      %50 = vst [vmem:[#allocation2 + $0xf0] sm:$0xff] 0.0
      %51 = vst [vmem:[#allocation2 + $0xf8] sm:$0xff] 0.0
      %52 = vst [vmem:[#allocation2 + $0x100] sm:$0xff] 0.0
      %53 = vst [vmem:[#allocation2 + $0x108] sm:$0xff] 0.0
      %54 = vst [vmem:[#allocation2 + $0x110] sm:$0xff] 0.0
      %55 = vst [vmem:[#allocation2 + $0x118] sm:$0xff] 0.0
      %56 = vst [vmem:[#allocation2 + $0x120] sm:$0xff] 0.0
      %57 = vst [vmem:[#allocation2 + $0x128] sm:$0xff] 0.0
      %58 = vst [vmem:[#allocation2 + $0x130] sm:$0xff] 0.0
      %59 = vst [vmem:[#allocation2 + $0x138] sm:$0xff] 0.0
      %60 = vst [vmem:[#allocation2 + $0x140] sm:$0xff] 0.0
      %61 = vst [vmem:[#allocation2 + $0x148] sm:$0xff] 0.0
      %62 = vst [vmem:[#allocation2 + $0x150] sm:$0xff] 0.0
      %63 = vst [vmem:[#allocation2 + $0x158] sm:$0xff] 0.0
      %64 = vst [vmem:[#allocation2 + $0x160] sm:$0xff] 0.0
      %65 = vst [vmem:[#allocation2 + $0x168] sm:$0xff] 0.0
      %66 = vst [vmem:[#allocation2 + $0x170] sm:$0xff] 0.0
      %67 = vst [vmem:[#allocation2 + $0x178] sm:$0xff] 0.0
      %68 = vst [vmem:[#allocation2 + $0x180] sm:$0xff] 0.0
      %69 = vst [vmem:[#allocation2 + $0x188] sm:$0xff] 0.0
      %70 = vst [vmem:[#allocation2 + $0x190] sm:$0xff] 0.0
      %71 = vst [vmem:[#allocation2 + $0x198] sm:$0xff] 0.0
      %72 = vst [vmem:[#allocation2 + $0x1a0] sm:$0xff] 0.0
      %73 = vst [vmem:[#allocation2 + $0x1a8] sm:$0xff] 0.0
      %74 = vst [vmem:[#allocation2 + $0x1b0] sm:$0xff] 0.0
      %75 = vst [vmem:[#allocation2 + $0x1b8] sm:$0xff] 0.0
      %76 = vst [vmem:[#allocation2 + $0x1c0] sm:$0xff] 0.0
      %77 = vst [vmem:[#allocation2 + $0x1c8] sm:$0xff] 0.0
      %78 = vst [vmem:[#allocation2 + $0x1d0] sm:$0xff] 0.0
      %79 = vst [vmem:[#allocation2 + $0x1d8] sm:$0xff] 0.0
      %80 = vst [vmem:[#allocation2 + $0x1e0] sm:$0xff] 0.0
      %81 = vst [vmem:[#allocation2 + $0x1e8] sm:$0xff] 0.0
      %82 = vst [vmem:[#allocation2 + $0x1f0] sm:$0xff] 0.0
      %83 = vst [vmem:[#allocation2 + $0x1f8] sm:$0xff] 0.0
    $region17: #{tpu_custom_call.1} parent=1 // pred_fallthru
      _
    %v84 = vld [vmem:[#allocation2] sm:$0xff]
    %v85 = vld [vmem:[#allocation2 + $0x8] sm:$0xff]
    %v86 = vld [vmem:[#allocation2 + $0x10] sm:$0xff]
    %v87 = vld [vmem:[#allocation2 + $0x18] sm:$0xff]
    %v88 = vld [vmem:[#allocation2 + $0x20] sm:$0xff]
    %v89 = vld [vmem:[#allocation2 + $0x28] sm:$0xff]
    %v90 = vld [vmem:[#allocation2 + $0x30] sm:$0xff]
    %v91 = vld [vmem:[#allocation2 + $0x38] sm:$0xff]
    %v92 = vld [vmem:[#allocation2 + $0x40] sm:$0xff]
    %v93 = vld [vmem:[#allocation2 + $0x48] sm:$0xff]
    %v94 = vld [vmem:[#allocation2 + $0x50] sm:$0xff]
    %v95 = vld [vmem:[#allocation2 + $0x58] sm:$0xff]
    %v96 = vld [vmem:[#allocation2 + $0x60] sm:$0xff]
    %v97 = vld [vmem:[#allocation2 + $0x68] sm:$0xff]
    %v98 = vld [vmem:[#allocation2 + $0x70] sm:$0xff]
    %v99 = vld [vmem:[#allocation2 + $0x78] sm:$0xff]
    %v100 = vld [vmem:[#allocation2 + $0x80] sm:$0xff]
    %v101 = vld [vmem:[#allocation2 + $0x88] sm:$0xff]
    %v102 = vld [vmem:[#allocation2 + $0x90] sm:$0xff]
    %v103 = vld [vmem:[#allocation2 + $0x98] sm:$0xff]
    %v104 = vld [vmem:[#allocation2 + $0xa0] sm:$0xff]
    %v105 = vld [vmem:[#allocation2 + $0xa8] sm:$0xff]
    %v106 = vld [vmem:[#allocation2 + $0xb0] sm:$0xff]
    %v107 = vld [vmem:[#allocation2 + $0xb8] sm:$0xff]
    %v108 = vld [vmem:[#allocation2 + $0xc0] sm:$0xff]
    %v109 = vld [vmem:[#allocation2 + $0xc8] sm:$0xff]
    %v110 = vld [vmem:[#allocation2 + $0xd0] sm:$0xff]
    %v111 = vld [vmem:[#allocation2 + $0xd8] sm:$0xff]
    %v112 = vld [vmem:[#allocation2 + $0xe0] sm:$0xff]
    %v113 = vld [vmem:[#allocation2 + $0xe8] sm:$0xff]
    %v114 = vld [vmem:[#allocation2 + $0xf0] sm:$0xff]
    %v115 = vld [vmem:[#allocation2 + $0xf8] sm:$0xff]
    %v116 = vld [vmem:[#allocation2 + $0x100] sm:$0xff]
    %v117 = vld [vmem:[#allocation2 + $0x108] sm:$0xff]
    %v118 = vld [vmem:[#allocation2 + $0x110] sm:$0xff]
    %v119 = vld [vmem:[#allocation2 + $0x118] sm:$0xff]
    %v120 = vld [vmem:[#allocation2 + $0x120] sm:$0xff]
    %v121 = vld [vmem:[#allocation2 + $0x128] sm:$0xff]
    %v122 = vld [vmem:[#allocation2 + $0x130] sm:$0xff]
    %v123 = vld [vmem:[#allocation2 + $0x138] sm:$0xff]
    %v124 = vld [vmem:[#allocation2 + $0x140] sm:$0xff]
    %v125 = vld [vmem:[#allocation2 + $0x148] sm:$0xff]
    %v126 = vld [vmem:[#allocation2 + $0x150] sm:$0xff]
    %v127 = vld [vmem:[#allocation2 + $0x158] sm:$0xff]
    %v128 = vld [vmem:[#allocation2 + $0x160] sm:$0xff]
    %v129 = vld [vmem:[#allocation2 + $0x168] sm:$0xff]
    %v130 = vld [vmem:[#allocation2 + $0x170] sm:$0xff]
    %v131 = vld [vmem:[#allocation2 + $0x178] sm:$0xff]
    %v132 = vld [vmem:[#allocation2 + $0x180] sm:$0xff]
    %v133 = vld [vmem:[#allocation2 + $0x188] sm:$0xff]
    %v134 = vld [vmem:[#allocation2 + $0x190] sm:$0xff]
    %v135 = vld [vmem:[#allocation2 + $0x198] sm:$0xff]
    %v136 = vld [vmem:[#allocation2 + $0x1a0] sm:$0xff]
    %v137 = vld [vmem:[#allocation2 + $0x1a8] sm:$0xff]
    %v138 = vld [vmem:[#allocation2 + $0x1b0] sm:$0xff]
    %v139 = vld [vmem:[#allocation2 + $0x1b8] sm:$0xff]
    %v140 = vld [vmem:[#allocation2 + $0x1c0] sm:$0xff]
    %v141 = vld [vmem:[#allocation2 + $0x1c8] sm:$0xff]
    %v142 = vld [vmem:[#allocation2 + $0x1d0] sm:$0xff]
    %v143 = vld [vmem:[#allocation2 + $0x1d8] sm:$0xff]
    %v144 = vld [vmem:[#allocation2 + $0x1e0] sm:$0xff]
    %v145 = vld [vmem:[#allocation2 + $0x1e8] sm:$0xff]
    %v146 = vld [vmem:[#allocation2 + $0x1f0] sm:$0xff]
    %v147 = vld [vmem:[#allocation2 + $0x1f8] sm:$0xff]
    %v148 = vld [vmem:[%s0] sm:$0xf]
    %v149 = vld [vmem:[%s0 + $0x4] sm:$0xf]
    %v150 = vld [vmem:[%s0 + $0x8] sm:$0xf]
    %v151 = vld [vmem:[%s0 + $0xc] sm:$0xf]
    %v152 = vld [vmem:[%s0 + $0x10] sm:$0xf]
    %v153 = vld [vmem:[%s0 + $0x14] sm:$0xf]
    %v154 = vld [vmem:[%s0 + $0x18] sm:$0xf]
    %v155 = vld [vmem:[%s0 + $0x1c] sm:$0xf]
    %v156 = vld [vmem:[%s0 + $0x20] sm:$0xf]
    %v157 = vld [vmem:[%s0 + $0x24] sm:$0xf]
    %v158 = vld [vmem:[%s0 + $0x28] sm:$0xf]
    %v159 = vld [vmem:[%s0 + $0x2c] sm:$0xf]
    %v160 = vld [vmem:[%s0 + $0x30] sm:$0xf]
    %v161 = vld [vmem:[%s0 + $0x34] sm:$0xf]
    %v162 = vld [vmem:[%s0 + $0x38] sm:$0xf]
    %v163 = vld [vmem:[%s0 + $0x3c] sm:$0xf]
    %v164 = vld [vmem:[%s0 + $0x40] sm:$0xf]
    %v165 = vld [vmem:[%s0 + $0x44] sm:$0xf]
    %v166 = vld [vmem:[%s0 + $0x48] sm:$0xf]
    %v167 = vld [vmem:[%s0 + $0x4c] sm:$0xf]
    %v168 = vld [vmem:[%s0 + $0x50] sm:$0xf]
    %v169 = vld [vmem:[%s0 + $0x54] sm:$0xf]
    %v170 = vld [vmem:[%s0 + $0x58] sm:$0xf]
    %v171 = vld [vmem:[%s0 + $0x5c] sm:$0xf]
    %v172 = vld [vmem:[%s0 + $0x60] sm:$0xf]
    %v173 = vld [vmem:[%s0 + $0x64] sm:$0xf]
    %v174 = vld [vmem:[%s0 + $0x68] sm:$0xf]
    %v175 = vld [vmem:[%s0 + $0x6c] sm:$0xf]
    %v176 = vld [vmem:[%s0 + $0x70] sm:$0xf]
    %v177 = vld [vmem:[%s0 + $0x74] sm:$0xf]
    %v178 = vld [vmem:[%s0 + $0x78] sm:$0xf]
    %v179 = vld [vmem:[%s0 + $0x7c] sm:$0xf]
    %v180 = vld [vmem:[%s0 + $0x80] sm:$0xf]
    %v181 = vld [vmem:[%s0 + $0x84] sm:$0xf]
    %v182 = vld [vmem:[%s0 + $0x88] sm:$0xf]
    %v183 = vld [vmem:[%s0 + $0x8c] sm:$0xf]
    %v184 = vld [vmem:[%s0 + $0x90] sm:$0xf]
    %v185 = vld [vmem:[%s0 + $0x94] sm:$0xf]
    %v186 = vld [vmem:[%s0 + $0x98] sm:$0xf]
    %v187 = vld [vmem:[%s0 + $0x9c] sm:$0xf]
    %v188 = vld [vmem:[%s0 + $0xa0] sm:$0xf]
    %v189 = vld [vmem:[%s0 + $0xa4] sm:$0xf]
    %v190 = vld [vmem:[%s0 + $0xa8] sm:$0xf]
    %v191 = vld [vmem:[%s0 + $0xac] sm:$0xf]
    %v192 = vld [vmem:[%s0 + $0xb0] sm:$0xf]
    %v193 = vld [vmem:[%s0 + $0xb4] sm:$0xf]
    %v194 = vld [vmem:[%s0 + $0xb8] sm:$0xf]
    %v195 = vld [vmem:[%s0 + $0xbc] sm:$0xf]
    %v196 = vld [vmem:[%s0 + $0xc0] sm:$0xf]
    %v197 = vld [vmem:[%s0 + $0xc4] sm:$0xf]
    %v198 = vld [vmem:[%s0 + $0xc8] sm:$0xf]
    %v199 = vld [vmem:[%s0 + $0xcc] sm:$0xf]
    %v200 = vld [vmem:[%s0 + $0xd0] sm:$0xf]
    %v201 = vld [vmem:[%s0 + $0xd4] sm:$0xf]
    %v202 = vld [vmem:[%s0 + $0xd8] sm:$0xf]
    %v203 = vld [vmem:[%s0 + $0xdc] sm:$0xf]
    %v204 = vld [vmem:[%s0 + $0xe0] sm:$0xf]
    %v205 = vld [vmem:[%s0 + $0xe4] sm:$0xf]
    %v206 = vld [vmem:[%s0 + $0xe8] sm:$0xf]
    %v207 = vld [vmem:[%s0 + $0xec] sm:$0xf]
    %v208 = vld [vmem:[%s0 + $0xf0] sm:$0xf]
    %v209 = vld [vmem:[%s0 + $0xf4] sm:$0xf]
    %v210 = vld [vmem:[%s0 + $0xf8] sm:$0xf]
    %v211 = vld [vmem:[%s0 + $0xfc] sm:$0xf]
    %v212 = vld [vmem:[%s1] sm:$0xf]
    %v213 = vld [vmem:[%s1 + $0x4] sm:$0xf]
    %v214 = vld [vmem:[%s1 + $0x8] sm:$0xf]
    %v215 = vld [vmem:[%s1 + $0xc] sm:$0xf]
    %v216 = vld [vmem:[%s1 + $0x10] sm:$0x3]
    %v281 = vunpack.c.l.b16 %v148
    %v282 = vunpack.c.l.b16 %v149
    %v283 = vunpack.c.l.b16 %v150
    %v284 = vunpack.c.l.b16 %v151
    %v285 = vunpack.c.l.b16 %v152
    %v286 = vunpack.c.l.b16 %v153
    %v287 = vunpack.c.l.b16 %v154
    %v288 = vunpack.c.l.b16 %v155
    %v289 = vunpack.c.l.b16 %v156
    %v290 = vunpack.c.l.b16 %v157
    %v291 = vunpack.c.l.b16 %v158
    %v292 = vunpack.c.l.b16 %v159
    %v293 = vunpack.c.l.b16 %v160
    %v294 = vunpack.c.l.b16 %v161
    %v295 = vunpack.c.l.b16 %v162
    %v296 = vunpack.c.l.b16 %v163
    %v297 = vunpack.c.l.b16 %v164
    %v298 = vunpack.c.l.b16 %v165
    %v299 = vunpack.c.l.b16 %v166
    %v300 = vunpack.c.l.b16 %v167
    %v301 = vunpack.c.l.b16 %v168
    %v302 = vunpack.c.l.b16 %v169
    %v303 = vunpack.c.l.b16 %v170
    %v304 = vunpack.c.l.b16 %v171
    %v305 = vunpack.c.l.b16 %v172
    %v306 = vunpack.c.l.b16 %v173
    %v307 = vunpack.c.l.b16 %v174
    %v308 = vunpack.c.l.b16 %v175
    %v309 = vunpack.c.l.b16 %v176
    %v310 = vunpack.c.l.b16 %v177
    %v311 = vunpack.c.l.b16 %v178
    %v312 = vunpack.c.l.b16 %v179
    %v313 = vunpack.c.l.b16 %v180
    %v314 = vunpack.c.l.b16 %v181
    %v315 = vunpack.c.l.b16 %v182
    %v316 = vunpack.c.l.b16 %v183
    %v317 = vunpack.c.l.b16 %v184
    %v318 = vunpack.c.l.b16 %v185
    %v319 = vunpack.c.l.b16 %v186
    %v320 = vunpack.c.l.b16 %v187
    %v321 = vunpack.c.l.b16 %v188
    %v322 = vunpack.c.l.b16 %v189
    %v323 = vunpack.c.l.b16 %v190
    %v324 = vunpack.c.l.b16 %v191
    %v325 = vunpack.c.l.b16 %v192
    %v326 = vunpack.c.l.b16 %v193
    %v327 = vunpack.c.l.b16 %v194
    %v328 = vunpack.c.l.b16 %v195
    %v329 = vunpack.c.l.b16 %v196
    %v330 = vunpack.c.l.b16 %v197
    %v331 = vunpack.c.l.b16 %v198
    %v332 = vunpack.c.l.b16 %v199
    %v333 = vunpack.c.l.b16 %v200
    %v334 = vunpack.c.l.b16 %v201
    %v335 = vunpack.c.l.b16 %v202
    %v336 = vunpack.c.l.b16 %v203
    %v337 = vunpack.c.l.b16 %v204
    %v338 = vunpack.c.l.b16 %v205
    %v339 = vunpack.c.l.b16 %v206
    %v340 = vunpack.c.l.b16 %v207
    %v341 = vunpack.c.l.b16 %v208
    %v342 = vunpack.c.l.b16 %v209
    %v343 = vunpack.c.l.b16 %v210
    %v344 = vunpack.c.l.b16 %v211
    %v345 = vpack.c.b16 %v282, %v281
    %v346 = vpack.c.b16 %v284, %v283
    %v347 = vpack.c.b16 %v286, %v285
    %v348 = vpack.c.b16 %v288, %v287
    %v349 = vpack.c.b16 %v290, %v289
    %v350 = vpack.c.b16 %v292, %v291
    %v351 = vpack.c.b16 %v294, %v293
    %v352 = vpack.c.b16 %v296, %v295
    %v353 = vpack.c.b16 %v298, %v297
    %v354 = vpack.c.b16 %v300, %v299
    %v355 = vpack.c.b16 %v302, %v301
    %v356 = vpack.c.b16 %v304, %v303
    %v357 = vpack.c.b16 %v306, %v305
    %v358 = vpack.c.b16 %v308, %v307
    %v359 = vpack.c.b16 %v310, %v309
    %v360 = vpack.c.b16 %v312, %v311
    %v361 = vpack.c.b16 %v314, %v313
    %v362 = vpack.c.b16 %v316, %v315
    %v363 = vpack.c.b16 %v318, %v317
    %v364 = vpack.c.b16 %v320, %v319
    %v365 = vpack.c.b16 %v322, %v321
    %v366 = vpack.c.b16 %v324, %v323
    %v367 = vpack.c.b16 %v326, %v325
    %v368 = vpack.c.b16 %v328, %v327
    %v369 = vpack.c.b16 %v330, %v329
    %v370 = vpack.c.b16 %v332, %v331
    %v371 = vpack.c.b16 %v334, %v333
    %v372 = vpack.c.b16 %v336, %v335
    %v373 = vpack.c.b16 %v338, %v337
    %v374 = vpack.c.b16 %v340, %v339
    %v375 = vpack.c.b16 %v342, %v341
    %v376 = vpack.c.b16 %v344, %v343
    %v382 = vunpack.c.l.b16 %v212
    %v383 = vunpack.c.l.b16 %v213
    %v384 = vunpack.c.l.b16 %v214
    %v385 = vunpack.c.l.b16 %v215
    %v386 = vunpack.c.l.b16 %v216
    %v387 = vpack.c.b16 %v383, %v382
    %v388 = vpack.c.b16 %v385, %v384
    %v389 = vpack.c.b16 %v386, %v386
    %vm392 = vcmask 293888
    %v394 = vsel %vm392, %v345, 0
    %v397 = vsel %vm392, %v346, 0
    %v400 = vsel %vm392, %v347, 0
    %v403 = vsel %vm392, %v348, 0
    %v406 = vsel %vm392, %v349, 0
    %v409 = vsel %vm392, %v350, 0
    %v412 = vsel %vm392, %v351, 0
    %v415 = vsel %vm392, %v352, 0
    %v418 = vsel %vm392, %v353, 0
    %v421 = vsel %vm392, %v354, 0
    %v424 = vsel %vm392, %v355, 0
    %v427 = vsel %vm392, %v356, 0
    %v430 = vsel %vm392, %v357, 0
    %v433 = vsel %vm392, %v358, 0
    %v436 = vsel %vm392, %v359, 0
    %v439 = vsel %vm392, %v360, 0
    %v442 = vsel %vm392, %v361, 0
    %v445 = vsel %vm392, %v362, 0
    %v448 = vsel %vm392, %v363, 0
    %v451 = vsel %vm392, %v364, 0
    %v454 = vsel %vm392, %v365, 0
    %v457 = vsel %vm392, %v366, 0
    %v460 = vsel %vm392, %v367, 0
    %v463 = vsel %vm392, %v368, 0
    %v466 = vsel %vm392, %v369, 0
    %v469 = vsel %vm392, %v370, 0
    %v472 = vsel %vm392, %v371, 0
    %v475 = vsel %vm392, %v372, 0
    %v478 = vsel %vm392, %v373, 0
    %v481 = vsel %vm392, %v374, 0
    %v484 = vsel %vm392, %v375, 0
    %v487 = vsel %vm392, %v376, 0
    %vm489 = vcmask 1041408
    %v491 = vsel %vm489, %v389, 0
    %493 = vmatprep.subr.bf16.mxu0 0
    %494 = vmatpush1.bf16.msra.mxu0 0
    %495 = vmatprep.subr.bf16.mxu0 0
    %496 = vmatpush1.bf16.msra.mxu0 0
    %497 = vmatprep.subr.bf16.mxu0 0
    %498 = vmatpush1.bf16.msra.mxu0 0
    %499 = vmatprep.subr.bf16.mxu0 0
    %500 = vmatpush1.bf16.msra.mxu0 0
    %501 = vmatprep.subr.bf16.mxu0 0
    %502 = vmatpush1.bf16.msra.mxu0 0
    %503 = vmatprep.subr.bf16.mxu0 0
    %504 = vmatpush1.bf16.msra.mxu0 %v491
    %505 = vmatprep.subr.bf16.mxu0 0
    %506 = vmatpush1.bf16.msra.mxu0 %v388
    %507 = vmatprep.subr.bf16.mxu0 0
    %508 = vmatpush1.bf16.msra.mxu0 %v387
    %509 = vmatprep.subr.bf16.mxu0 0
    %510 = vmatpush2.bf16.msra.mxu0 0
    %511 = vmatprep.subr.bf16.mxu0 0
    %512 = vmatpush2.bf16.msra.mxu0 0
    %513 = vmatprep.subr.bf16.mxu0 0
    %514 = vmatpush2.bf16.msra.mxu0 0
    %515 = vmatprep.subr.bf16.mxu0 0
    %516 = vmatpush2.bf16.msra.mxu0 0
    %517 = vmatprep.subr.bf16.mxu0 0
    %518 = vmatpush2.bf16.msra.mxu0 0
    %519 = vmatprep.subr.bf16.mxu0 0
    %520 = vmatpush2.bf16.msra.mxu0 0
    %521 = vmatprep.subr.bf16.mxu0 0
    %522 = vmatpush2.bf16.msra.mxu0 0
    %523 = vmatprep.subr.bf16.mxu0 0
    %524 = vmatpush2.bf16.msra.mxu0 0
    %525 = vmatprep.mubr.bf16.mxu0 0
    %526 = vmatmul.mubr.bf16.gmra.mxu0 %v394
    %v527 = vpop.f32.mrf.mxu0
    %v528 = vadd.f32 0.0, %v527
    %v529 = vpop.f32.mrf.mxu0
    %v530 = vpop.f32.mrf.mxu0
    %v531 = vadd.f32 0.0, %v530
    %v532 = vpop.f32.mrf.mxu0
    %533 = vmatprep.mubr.bf16.mxu0 0
    %534 = vmatmul.mubr.bf16.gmra.mxu0 %v397
    %v535 = vpop.f32.mrf.mxu0
    %v536 = vadd.f32 0.0, %v535
    %v537 = vpop.f32.mrf.mxu0
    %v538 = vpop.f32.mrf.mxu0
    %v539 = vadd.f32 0.0, %v538
    %v540 = vpop.f32.mrf.mxu0
    %541 = vmatprep.mubr.bf16.mxu0 0
    %542 = vmatmul.mubr.bf16.gmra.mxu0 %v400
    %v543 = vpop.f32.mrf.mxu0
    %v544 = vadd.f32 0.0, %v543
    %v545 = vpop.f32.mrf.mxu0
    %v546 = vpop.f32.mrf.mxu0
    %v547 = vadd.f32 0.0, %v546
    %v548 = vpop.f32.mrf.mxu0
    %549 = vmatprep.mubr.bf16.mxu0 0
    %550 = vmatmul.mubr.bf16.gmra.mxu0 %v403
    %v551 = vpop.f32.mrf.mxu0
    %v552 = vadd.f32 0.0, %v551
    %v553 = vpop.f32.mrf.mxu0
    %v554 = vpop.f32.mrf.mxu0
    %v555 = vadd.f32 0.0, %v554
    %v556 = vpop.f32.mrf.mxu0
    %557 = vmatprep.mubr.bf16.mxu0 0
    %558 = vmatmul.mubr.bf16.gmra.mxu0 %v406
    %v559 = vpop.f32.mrf.mxu0
    %v560 = vadd.f32 0.0, %v559
    %v561 = vpop.f32.mrf.mxu0
    %v562 = vpop.f32.mrf.mxu0
    %v563 = vadd.f32 0.0, %v562
    %v564 = vpop.f32.mrf.mxu0
    %565 = vmatprep.mubr.bf16.mxu0 0
    %566 = vmatmul.mubr.bf16.gmra.mxu0 %v409
    %v567 = vpop.f32.mrf.mxu0
    %v568 = vadd.f32 0.0, %v567
    %v569 = vpop.f32.mrf.mxu0
    %v570 = vpop.f32.mrf.mxu0
    %v571 = vadd.f32 0.0, %v570
    %v572 = vpop.f32.mrf.mxu0
    %573 = vmatprep.mubr.bf16.mxu0 0
    %574 = vmatmul.mubr.bf16.gmra.mxu0 %v412
    %v575 = vpop.f32.mrf.mxu0
    %v576 = vadd.f32 0.0, %v575
    %v577 = vpop.f32.mrf.mxu0
    %v578 = vpop.f32.mrf.mxu0
    %v579 = vadd.f32 0.0, %v578
    %v580 = vpop.f32.mrf.mxu0
    %581 = vmatprep.mubr.bf16.mxu0 0
    %582 = vmatmul.mubr.bf16.gmra.mxu0 %v415
    %v583 = vpop.f32.mrf.mxu0
    %v584 = vadd.f32 0.0, %v583
    %v585 = vpop.f32.mrf.mxu0
    %v586 = vpop.f32.mrf.mxu0
    %v587 = vadd.f32 0.0, %v586
    %v588 = vpop.f32.mrf.mxu0
    %589 = vmatprep.mubr.bf16.mxu0 0
    %590 = vmatmul.mubr.bf16.gmra.mxu0 %v418
    %v591 = vpop.f32.mrf.mxu0
    %v592 = vadd.f32 0.0, %v591
    %v593 = vpop.f32.mrf.mxu0
    %v594 = vpop.f32.mrf.mxu0
    %v595 = vadd.f32 0.0, %v594
    %v596 = vpop.f32.mrf.mxu0
    %597 = vmatprep.mubr.bf16.mxu0 0
    %598 = vmatmul.mubr.bf16.gmra.mxu0 %v421
    %v599 = vpop.f32.mrf.mxu0
    %v600 = vadd.f32 0.0, %v599
    %v601 = vpop.f32.mrf.mxu0
    %v602 = vpop.f32.mrf.mxu0
    %v603 = vadd.f32 0.0, %v602
    %v604 = vpop.f32.mrf.mxu0
    %605 = vmatprep.mubr.bf16.mxu0 0
    %606 = vmatmul.mubr.bf16.gmra.mxu0 %v424
    %v607 = vpop.f32.mrf.mxu0
    %v608 = vadd.f32 0.0, %v607
    %v609 = vpop.f32.mrf.mxu0
    %v610 = vpop.f32.mrf.mxu0
    %v611 = vadd.f32 0.0, %v610
    %v612 = vpop.f32.mrf.mxu0
    %613 = vmatprep.mubr.bf16.mxu0 0
    %614 = vmatmul.mubr.bf16.gmra.mxu0 %v427
    %v615 = vpop.f32.mrf.mxu0
    %v616 = vadd.f32 0.0, %v615
    %v617 = vpop.f32.mrf.mxu0
    %v618 = vpop.f32.mrf.mxu0
    %v619 = vadd.f32 0.0, %v618
    %v620 = vpop.f32.mrf.mxu0
    %621 = vmatprep.mubr.bf16.mxu0 0
    %622 = vmatmul.mubr.bf16.gmra.mxu0 %v430
    %v623 = vpop.f32.mrf.mxu0
    %v624 = vadd.f32 0.0, %v623
    %v625 = vpop.f32.mrf.mxu0
    %v626 = vpop.f32.mrf.mxu0
    %v627 = vadd.f32 0.0, %v626
    %v628 = vpop.f32.mrf.mxu0
    %629 = vmatprep.mubr.bf16.mxu0 0
    %630 = vmatmul.mubr.bf16.gmra.mxu0 %v433
    %v631 = vpop.f32.mrf.mxu0
    %v632 = vadd.f32 0.0, %v631
    %v633 = vpop.f32.mrf.mxu0
    %v634 = vpop.f32.mrf.mxu0
    %v635 = vadd.f32 0.0, %v634
    %v636 = vpop.f32.mrf.mxu0
    %637 = vmatprep.mubr.bf16.mxu0 0
    %638 = vmatmul.mubr.bf16.gmra.mxu0 %v436
    %v639 = vpop.f32.mrf.mxu0
    %v640 = vadd.f32 0.0, %v639
    %v641 = vpop.f32.mrf.mxu0
    %v642 = vpop.f32.mrf.mxu0
    %v643 = vadd.f32 0.0, %v642
    %v644 = vpop.f32.mrf.mxu0
    %645 = vmatprep.mubr.bf16.mxu0 0
    %646 = vmatmul.mubr.bf16.gmra.mxu0 %v439
    %v647 = vpop.f32.mrf.mxu0
    %v648 = vadd.f32 0.0, %v647
    %v649 = vpop.f32.mrf.mxu0
    %v650 = vpop.f32.mrf.mxu0
    %v651 = vadd.f32 0.0, %v650
    %v652 = vpop.f32.mrf.mxu0
    %653 = vmatprep.mubr.bf16.mxu0 0
    %654 = vmatmul.mubr.bf16.gmra.mxu0 %v442
    %v655 = vpop.f32.mrf.mxu0
    %v656 = vadd.f32 0.0, %v655
    %v657 = vpop.f32.mrf.mxu0
    %v658 = vpop.f32.mrf.mxu0
    %v659 = vadd.f32 0.0, %v658
    %v660 = vpop.f32.mrf.mxu0
    %661 = vmatprep.mubr.bf16.mxu0 0
    %662 = vmatmul.mubr.bf16.gmra.mxu0 %v445
    %v663 = vpop.f32.mrf.mxu0
    %v664 = vadd.f32 0.0, %v663
    %v665 = vpop.f32.mrf.mxu0
    %v666 = vpop.f32.mrf.mxu0
    %v667 = vadd.f32 0.0, %v666
    %v668 = vpop.f32.mrf.mxu0
    %669 = vmatprep.mubr.bf16.mxu0 0
    %670 = vmatmul.mubr.bf16.gmra.mxu0 %v448
    %v671 = vpop.f32.mrf.mxu0
    %v672 = vadd.f32 0.0, %v671
    %v673 = vpop.f32.mrf.mxu0
    %v674 = vpop.f32.mrf.mxu0
    %v675 = vadd.f32 0.0, %v674
    %v676 = vpop.f32.mrf.mxu0
    %677 = vmatprep.mubr.bf16.mxu0 0
    %678 = vmatmul.mubr.bf16.gmra.mxu0 %v451
    %v679 = vpop.f32.mrf.mxu0
    %v680 = vadd.f32 0.0, %v679
    %v681 = vpop.f32.mrf.mxu0
    %v682 = vpop.f32.mrf.mxu0
    %v683 = vadd.f32 0.0, %v682
    %v684 = vpop.f32.mrf.mxu0
    %685 = vmatprep.mubr.bf16.mxu0 0
    %686 = vmatmul.mubr.bf16.gmra.mxu0 %v454
    %v687 = vpop.f32.mrf.mxu0
    %v688 = vadd.f32 0.0, %v687
    %v689 = vpop.f32.mrf.mxu0
    %v690 = vpop.f32.mrf.mxu0
    %v691 = vadd.f32 0.0, %v690
    %v692 = vpop.f32.mrf.mxu0
    %693 = vmatprep.mubr.bf16.mxu0 0
    %694 = vmatmul.mubr.bf16.gmra.mxu0 %v457
    %v695 = vpop.f32.mrf.mxu0
    %v696 = vadd.f32 0.0, %v695
    %v697 = vpop.f32.mrf.mxu0
    %v698 = vpop.f32.mrf.mxu0
    %v699 = vadd.f32 0.0, %v698
    %v700 = vpop.f32.mrf.mxu0
    %701 = vmatprep.mubr.bf16.mxu0 0
    %702 = vmatmul.mubr.bf16.gmra.mxu0 %v460
    %v703 = vpop.f32.mrf.mxu0
    %v704 = vadd.f32 0.0, %v703
    %v705 = vpop.f32.mrf.mxu0
    %v706 = vpop.f32.mrf.mxu0
    %v707 = vadd.f32 0.0, %v706
    %v708 = vpop.f32.mrf.mxu0
    %709 = vmatprep.mubr.bf16.mxu0 0
    %710 = vmatmul.mubr.bf16.gmra.mxu0 %v463
    %v711 = vpop.f32.mrf.mxu0
    %v712 = vadd.f32 0.0, %v711
    %v713 = vpop.f32.mrf.mxu0
    %v714 = vpop.f32.mrf.mxu0
    %v715 = vadd.f32 0.0, %v714
    %v716 = vpop.f32.mrf.mxu0
    %717 = vmatprep.mubr.bf16.mxu0 0
    %718 = vmatmul.mubr.bf16.gmra.mxu0 %v466
    %v719 = vpop.f32.mrf.mxu0
    %v720 = vadd.f32 0.0, %v719
    %v721 = vpop.f32.mrf.mxu0
    %v722 = vpop.f32.mrf.mxu0
    %v723 = vadd.f32 0.0, %v722
    %v724 = vpop.f32.mrf.mxu0
    %725 = vmatprep.mubr.bf16.mxu0 0
    %726 = vmatmul.mubr.bf16.gmra.mxu0 %v469
    %v727 = vpop.f32.mrf.mxu0
    %v728 = vadd.f32 0.0, %v727
    %v729 = vpop.f32.mrf.mxu0
    %v730 = vpop.f32.mrf.mxu0
    %v731 = vadd.f32 0.0, %v730
    %v732 = vpop.f32.mrf.mxu0
    %733 = vmatprep.mubr.bf16.mxu0 0
    %734 = vmatmul.mubr.bf16.gmra.mxu0 %v472
    %v735 = vpop.f32.mrf.mxu0
    %v736 = vadd.f32 0.0, %v735
    %v737 = vpop.f32.mrf.mxu0
    %v738 = vpop.f32.mrf.mxu0
    %v739 = vadd.f32 0.0, %v738
    %v740 = vpop.f32.mrf.mxu0
    %741 = vmatprep.mubr.bf16.mxu0 0
    %742 = vmatmul.mubr.bf16.gmra.mxu0 %v475
    %v743 = vpop.f32.mrf.mxu0
    %v744 = vadd.f32 0.0, %v743
    %v745 = vpop.f32.mrf.mxu0
    %v746 = vpop.f32.mrf.mxu0
    %v747 = vadd.f32 0.0, %v746
    %v748 = vpop.f32.mrf.mxu0
    %749 = vmatprep.mubr.bf16.mxu0 0
    %750 = vmatmul.mubr.bf16.gmra.mxu0 %v478
    %v751 = vpop.f32.mrf.mxu0
    %v752 = vadd.f32 0.0, %v751
    %v753 = vpop.f32.mrf.mxu0
    %v754 = vpop.f32.mrf.mxu0
    %v755 = vadd.f32 0.0, %v754
    %v756 = vpop.f32.mrf.mxu0
    %757 = vmatprep.mubr.bf16.mxu0 0
    %758 = vmatmul.mubr.bf16.gmra.mxu0 %v481
    %v759 = vpop.f32.mrf.mxu0
    %v760 = vadd.f32 0.0, %v759
    %v761 = vpop.f32.mrf.mxu0
    %v762 = vpop.f32.mrf.mxu0
    %v763 = vadd.f32 0.0, %v762
    %v764 = vpop.f32.mrf.mxu0
    %765 = vmatprep.mubr.bf16.mxu0 0
    %766 = vmatmul.mubr.bf16.gmra.mxu0 %v484
    %v767 = vpop.f32.mrf.mxu0
    %v768 = vadd.f32 0.0, %v767
    %v769 = vpop.f32.mrf.mxu0
    %v770 = vpop.f32.mrf.mxu0
    %v771 = vadd.f32 0.0, %v770
    %v772 = vpop.f32.mrf.mxu0
    %773 = vmatprep.mubr.bf16.mxu0 0
    %774 = vmatmul.mubr.bf16.gmra.mxu0 %v487
    %v775 = vpop.f32.mrf.mxu0
    %v776 = vadd.f32 0.0, %v775
    %v777 = vpop.f32.mrf.mxu0
    %v778 = vpop.f32.mrf.mxu0
    %v779 = vadd.f32 0.0, %v778
    %v780 = vpop.f32.mrf.mxu0
    %781 = vdwg.mxu0
    %v782 = vadd.f32 %v84, %v528
    %v783 = vadd.f32 %v85, %v531
    %v784 = vadd.f32 %v86, %v536
    %v785 = vadd.f32 %v87, %v539
    %v786 = vadd.f32 %v88, %v544
    %v787 = vadd.f32 %v89, %v547
    %v788 = vadd.f32 %v90, %v552
    %v789 = vadd.f32 %v91, %v555
    %v790 = vadd.f32 %v92, %v560
    %v791 = vadd.f32 %v93, %v563
    %v792 = vadd.f32 %v94, %v568
    %v793 = vadd.f32 %v95, %v571
    %v794 = vadd.f32 %v96, %v576
    %v795 = vadd.f32 %v97, %v579
    %v796 = vadd.f32 %v98, %v584
    %v797 = vadd.f32 %v99, %v587
    %v798 = vadd.f32 %v100, %v592
    %v799 = vadd.f32 %v101, %v595
    %v800 = vadd.f32 %v102, %v600
    %v801 = vadd.f32 %v103, %v603
    %v802 = vadd.f32 %v104, %v608
    %v803 = vadd.f32 %v105, %v611
    %v804 = vadd.f32 %v106, %v616
    %v805 = vadd.f32 %v107, %v619
    %v806 = vadd.f32 %v108, %v624
    %v807 = vadd.f32 %v109, %v627
    %v808 = vadd.f32 %v110, %v632
    %v809 = vadd.f32 %v111, %v635
    %v810 = vadd.f32 %v112, %v640
    %v811 = vadd.f32 %v113, %v643
    %v812 = vadd.f32 %v114, %v648
    %v813 = vadd.f32 %v115, %v651
    %v814 = vadd.f32 %v116, %v656
    %v815 = vadd.f32 %v117, %v659
    %v816 = vadd.f32 %v118, %v664
    %v817 = vadd.f32 %v119, %v667
    %v818 = vadd.f32 %v120, %v672
    %v819 = vadd.f32 %v121, %v675
    %v820 = vadd.f32 %v122, %v680
    %v821 = vadd.f32 %v123, %v683
    %v822 = vadd.f32 %v124, %v688
    %v823 = vadd.f32 %v125, %v691
    %v824 = vadd.f32 %v126, %v696
    %v825 = vadd.f32 %v127, %v699
    %v826 = vadd.f32 %v128, %v704
    %v827 = vadd.f32 %v129, %v707
    %v828 = vadd.f32 %v130, %v712
    %v829 = vadd.f32 %v131, %v715
    %v830 = vadd.f32 %v132, %v720
    %v831 = vadd.f32 %v133, %v723
    %v832 = vadd.f32 %v134, %v728
    %v833 = vadd.f32 %v135, %v731
    %v834 = vadd.f32 %v136, %v736
    %v835 = vadd.f32 %v137, %v739
    %v836 = vadd.f32 %v138, %v744
    %v837 = vadd.f32 %v139, %v747
    %v838 = vadd.f32 %v140, %v752
    %v839 = vadd.f32 %v141, %v755
    %v840 = vadd.f32 %v142, %v760
    %v841 = vadd.f32 %v143, %v763
    %v842 = vadd.f32 %v144, %v768
    %v843 = vadd.f32 %v145, %v771
    %v844 = vadd.f32 %v146, %v776
    %v845 = vadd.f32 %v147, %v779
    %846 = vst [vmem:[#allocation2] sm:$0xff] %v782
    %847 = vst [vmem:[#allocation2 + $0x8] sm:$0xff] %v783
    %848 = vst [vmem:[#allocation2 + $0x10] sm:$0xff] %v784
    %849 = vst [vmem:[#allocation2 + $0x18] sm:$0xff] %v785
    %850 = vst [vmem:[#allocation2 + $0x20] sm:$0xff] %v786
    %851 = vst [vmem:[#allocation2 + $0x28] sm:$0xff] %v787
    %852 = vst [vmem:[#allocation2 + $0x30] sm:$0xff] %v788
    %853 = vst [vmem:[#allocation2 + $0x38] sm:$0xff] %v789
    %854 = vst [vmem:[#allocation2 + $0x40] sm:$0xff] %v790
    %855 = vst [vmem:[#allocation2 + $0x48] sm:$0xff] %v791
    %856 = vst [vmem:[#allocation2 + $0x50] sm:$0xff] %v792
    %857 = vst [vmem:[#allocation2 + $0x58] sm:$0xff] %v793
    %858 = vst [vmem:[#allocation2 + $0x60] sm:$0xff] %v794
    %859 = vst [vmem:[#allocation2 + $0x68] sm:$0xff] %v795
    %860 = vst [vmem:[#allocation2 + $0x70] sm:$0xff] %v796
    %861 = vst [vmem:[#allocation2 + $0x78] sm:$0xff] %v797
    %862 = vst [vmem:[#allocation2 + $0x80] sm:$0xff] %v798
    %863 = vst [vmem:[#allocation2 + $0x88] sm:$0xff] %v799
    %864 = vst [vmem:[#allocation2 + $0x90] sm:$0xff] %v800
    %865 = vst [vmem:[#allocation2 + $0x98] sm:$0xff] %v801
    %866 = vst [vmem:[#allocation2 + $0xa0] sm:$0xff] %v802
    %867 = vst [vmem:[#allocation2 + $0xa8] sm:$0xff] %v803
    %868 = vst [vmem:[#allocation2 + $0xb0] sm:$0xff] %v804
    %869 = vst [vmem:[#allocation2 + $0xb8] sm:$0xff] %v805
    %870 = vst [vmem:[#allocation2 + $0xc0] sm:$0xff] %v806
    %871 = vst [vmem:[#allocation2 + $0xc8] sm:$0xff] %v807
    %872 = vst [vmem:[#allocation2 + $0xd0] sm:$0xff] %v808
    %873 = vst [vmem:[#allocation2 + $0xd8] sm:$0xff] %v809
    %874 = vst [vmem:[#allocation2 + $0xe0] sm:$0xff] %v810
    %875 = vst [vmem:[#allocation2 + $0xe8] sm:$0xff] %v811
    %876 = vst [vmem:[#allocation2 + $0xf0] sm:$0xff] %v812
    %877 = vst [vmem:[#allocation2 + $0xf8] sm:$0xff] %v813
    %878 = vst [vmem:[#allocation2 + $0x100] sm:$0xff] %v814
    %879 = vst [vmem:[#allocation2 + $0x108] sm:$0xff] %v815
    %880 = vst [vmem:[#allocation2 + $0x110] sm:$0xff] %v816
    %881 = vst [vmem:[#allocation2 + $0x118] sm:$0xff] %v817
    %882 = vst [vmem:[#allocation2 + $0x120] sm:$0xff] %v818
    %883 = vst [vmem:[#allocation2 + $0x128] sm:$0xff] %v819
    %884 = vst [vmem:[#allocation2 + $0x130] sm:$0xff] %v820
    %885 = vst [vmem:[#allocation2 + $0x138] sm:$0xff] %v821
    %886 = vst [vmem:[#allocation2 + $0x140] sm:$0xff] %v822
    %887 = vst [vmem:[#allocation2 + $0x148] sm:$0xff] %v823
    %888 = vst [vmem:[#allocation2 + $0x150] sm:$0xff] %v824
    %889 = vst [vmem:[#allocation2 + $0x158] sm:$0xff] %v825
    %890 = vst [vmem:[#allocation2 + $0x160] sm:$0xff] %v826
    %891 = vst [vmem:[#allocation2 + $0x168] sm:$0xff] %v827
    %892 = vst [vmem:[#allocation2 + $0x170] sm:$0xff] %v828
    %893 = vst [vmem:[#allocation2 + $0x178] sm:$0xff] %v829
    %894 = vst [vmem:[#allocation2 + $0x180] sm:$0xff] %v830
    %895 = vst [vmem:[#allocation2 + $0x188] sm:$0xff] %v831
    %896 = vst [vmem:[#allocation2 + $0x190] sm:$0xff] %v832
    %897 = vst [vmem:[#allocation2 + $0x198] sm:$0xff] %v833
    %898 = vst [vmem:[#allocation2 + $0x1a0] sm:$0xff] %v834
    %899 = vst [vmem:[#allocation2 + $0x1a8] sm:$0xff] %v835
    %900 = vst [vmem:[#allocation2 + $0x1b0] sm:$0xff] %v836
    %901 = vst [vmem:[#allocation2 + $0x1b8] sm:$0xff] %v837
    %902 = vst [vmem:[#allocation2 + $0x1c0] sm:$0xff] %v838
    %903 = vst [vmem:[#allocation2 + $0x1c8] sm:$0xff] %v839
    %904 = vst [vmem:[#allocation2 + $0x1d0] sm:$0xff] %v840
    %905 = vst [vmem:[#allocation2 + $0x1d8] sm:$0xff] %v841
    %906 = vst [vmem:[#allocation2 + $0x1e0] sm:$0xff] %v842
    %907 = vst [vmem:[#allocation2 + $0x1e8] sm:$0xff] %v843
    %908 = vst [vmem:[#allocation2 + $0x1f0] sm:$0xff] %v844
    %909 = vst [vmem:[#allocation2 + $0x1f8] sm:$0xff] %v845
    // Predicated region
    $region18: #{tpu_custom_call.1} parent=1 // pred_check
      %p910 = pneg %p16
    $region19: #{tpu_custom_call.1} parent=1 // pred_check_branch
      %912 = sbr.rel (%p910) target = $region21
    $region20: #{tpu_custom_call.1} parent=1 // pred_region
      %v913 = vld [vmem:[#allocation2] sm:$0xff]
      %v914 = vld [vmem:[#allocation2 + $0x8] sm:$0xff]
      %v915 = vld [vmem:[#allocation2 + $0x10] sm:$0xff]
      %v916 = vld [vmem:[#allocation2 + $0x18] sm:$0xff]
      %v917 = vld [vmem:[#allocation2 + $0x20] sm:$0xff]
      %v918 = vld [vmem:[#allocation2 + $0x28] sm:$0xff]
      %v919 = vld [vmem:[#allocation2 + $0x30] sm:$0xff]
      %v920 = vld [vmem:[#allocation2 + $0x38] sm:$0xff]
      %v921 = vld [vmem:[#allocation2 + $0x40] sm:$0xff]
      %v922 = vld [vmem:[#allocation2 + $0x48] sm:$0xff]
      %v923 = vld [vmem:[#allocation2 + $0x50] sm:$0xff]
      %v924 = vld [vmem:[#allocation2 + $0x58] sm:$0xff]
      %v925 = vld [vmem:[#allocation2 + $0x60] sm:$0xff]
      %v926 = vld [vmem:[#allocation2 + $0x68] sm:$0xff]
      %v927 = vld [vmem:[#allocation2 + $0x70] sm:$0xff]
      %v928 = vld [vmem:[#allocation2 + $0x78] sm:$0xff]
      %v929 = vld [vmem:[#allocation2 + $0x80] sm:$0xff]
      %v930 = vld [vmem:[#allocation2 + $0x88] sm:$0xff]
      %v931 = vld [vmem:[#allocation2 + $0x90] sm:$0xff]
      %v932 = vld [vmem:[#allocation2 + $0x98] sm:$0xff]
      %v933 = vld [vmem:[#allocation2 + $0xa0] sm:$0xff]
      %v934 = vld [vmem:[#allocation2 + $0xa8] sm:$0xff]
      %v935 = vld [vmem:[#allocation2 + $0xb0] sm:$0xff]
      %v936 = vld [vmem:[#allocation2 + $0xb8] sm:$0xff]
      %v937 = vld [vmem:[#allocation2 + $0xc0] sm:$0xff]
      %v938 = vld [vmem:[#allocation2 + $0xc8] sm:$0xff]
      %v939 = vld [vmem:[#allocation2 + $0xd0] sm:$0xff]
      %v940 = vld [vmem:[#allocation2 + $0xd8] sm:$0xff]
      %v941 = vld [vmem:[#allocation2 + $0xe0] sm:$0xff]
      %v942 = vld [vmem:[#allocation2 + $0xe8] sm:$0xff]
      %v943 = vld [vmem:[#allocation2 + $0xf0] sm:$0xff]
      %v944 = vld [vmem:[#allocation2 + $0xf8] sm:$0xff]
      %v945 = vld [vmem:[#allocation2 + $0x100] sm:$0xff]
      %v946 = vld [vmem:[#allocation2 + $0x108] sm:$0xff]
      %v947 = vld [vmem:[#allocation2 + $0x110] sm:$0xff]
      %v948 = vld [vmem:[#allocation2 + $0x118] sm:$0xff]
      %v949 = vld [vmem:[#allocation2 + $0x120] sm:$0xff]
      %v950 = vld [vmem:[#allocation2 + $0x128] sm:$0xff]
      %v951 = vld [vmem:[#allocation2 + $0x130] sm:$0xff]
      %v952 = vld [vmem:[#allocation2 + $0x138] sm:$0xff]
      %v953 = vld [vmem:[#allocation2 + $0x140] sm:$0xff]
      %v954 = vld [vmem:[#allocation2 + $0x148] sm:$0xff]
      %v955 = vld [vmem:[#allocation2 + $0x150] sm:$0xff]
      %v956 = vld [vmem:[#allocation2 + $0x158] sm:$0xff]
      %v957 = vld [vmem:[#allocation2 + $0x160] sm:$0xff]
      %v958 = vld [vmem:[#allocation2 + $0x168] sm:$0xff]
      %v959 = vld [vmem:[#allocation2 + $0x170] sm:$0xff]
      %v960 = vld [vmem:[#allocation2 + $0x178] sm:$0xff]
      %v961 = vld [vmem:[#allocation2 + $0x180] sm:$0xff]
      %v962 = vld [vmem:[#allocation2 + $0x188] sm:$0xff]
      %v963 = vld [vmem:[#allocation2 + $0x190] sm:$0xff]
      %v964 = vld [vmem:[#allocation2 + $0x198] sm:$0xff]
      %v965 = vld [vmem:[#allocation2 + $0x1a0] sm:$0xff]
      %v966 = vld [vmem:[#allocation2 + $0x1a8] sm:$0xff]
      %v967 = vld [vmem:[#allocation2 + $0x1b0] sm:$0xff]
      %v968 = vld [vmem:[#allocation2 + $0x1b8] sm:$0xff]
      %v969 = vld [vmem:[#allocation2 + $0x1c0] sm:$0xff]
      %v970 = vld [vmem:[#allocation2 + $0x1c8] sm:$0xff]
      %v971 = vld [vmem:[#allocation2 + $0x1d0] sm:$0xff]
      %v972 = vld [vmem:[#allocation2 + $0x1d8] sm:$0xff]
      %v973 = vld [vmem:[#allocation2 + $0x1e0] sm:$0xff]
      %v974 = vld [vmem:[#allocation2 + $0x1e8] sm:$0xff]
      %v975 = vld [vmem:[#allocation2 + $0x1f0] sm:$0xff]
      %v976 = vld [vmem:[#allocation2 + $0x1f8] sm:$0xff]
      %v977 = vld [vmem:[%s2] sm:$0x1]
      %v979 = vlaneseq
      %v980 = vshrl.u32 %v979, 7
      %v981 = vsub.s32 0, %v980
      %v982 = vrot.slane %v977, %v981
      %v984 = vadd.f32 %v913, %v982
      %v985 = vadd.f32 %v914, %v982
      %v986 = vadd.f32 %v915, %v982
      %v987 = vadd.f32 %v916, %v982
      %v988 = vadd.f32 %v917, %v982
      %v989 = vadd.f32 %v918, %v982
      %v990 = vadd.f32 %v919, %v982
      %v991 = vadd.f32 %v920, %v982
      %v992 = vadd.f32 %v921, %v982
      %v993 = vadd.f32 %v922, %v982
      %v994 = vadd.f32 %v923, %v982
      %v995 = vadd.f32 %v924, %v982
      %v996 = vadd.f32 %v925, %v982
      %v997 = vadd.f32 %v926, %v982
      %v998 = vadd.f32 %v927, %v982
      %v999 = vadd.f32 %v928, %v982
      %v1000 = vadd.f32 %v929, %v982
      %v1001 = vadd.f32 %v930, %v982
      %v1002 = vadd.f32 %v931, %v982
      %v1003 = vadd.f32 %v932, %v982
      %v1004 = vadd.f32 %v933, %v982
      %v1005 = vadd.f32 %v934, %v982
      %v1006 = vadd.f32 %v935, %v982
      %v1007 = vadd.f32 %v936, %v982
      %v1008 = vadd.f32 %v937, %v982
      %v1009 = vadd.f32 %v938, %v982
      %v1010 = vadd.f32 %v939, %v982
      %v1011 = vadd.f32 %v940, %v982
      %v1012 = vadd.f32 %v941, %v982
      %v1013 = vadd.f32 %v942, %v982
      %v1014 = vadd.f32 %v943, %v982
      %v1015 = vadd.f32 %v944, %v982
      %v1016 = vadd.f32 %v945, %v982
      %v1017 = vadd.f32 %v946, %v982
      %v1018 = vadd.f32 %v947, %v982
      %v1019 = vadd.f32 %v948, %v982
      %v1020 = vadd.f32 %v949, %v982
      %v1021 = vadd.f32 %v950, %v982
      %v1022 = vadd.f32 %v951, %v982
      %v1023 = vadd.f32 %v952, %v982
      %v1024 = vadd.f32 %v953, %v982
      %v1025 = vadd.f32 %v954, %v982
      %v1026 = vadd.f32 %v955, %v982
      %v1027 = vadd.f32 %v956, %v982
      %v1028 = vadd.f32 %v957, %v982
      %v1029 = vadd.f32 %v958, %v982
      %v1030 = vadd.f32 %v959, %v982
      %v1031 = vadd.f32 %v960, %v982
      %v1032 = vadd.f32 %v961, %v982
      %v1033 = vadd.f32 %v962, %v982
      %v1034 = vadd.f32 %v963, %v982
      %v1035 = vadd.f32 %v964, %v982
      %v1036 = vadd.f32 %v965, %v982
      %v1037 = vadd.f32 %v966, %v982
      %v1038 = vadd.f32 %v967, %v982
      %v1039 = vadd.f32 %v968, %v982
      %v1040 = vadd.f32 %v969, %v982
      %v1041 = vadd.f32 %v970, %v982
      %v1042 = vadd.f32 %v971, %v982
      %v1043 = vadd.f32 %v972, %v982
      %v1044 = vadd.f32 %v973, %v982
      %v1045 = vadd.f32 %v974, %v982
      %v1046 = vadd.f32 %v975, %v982
      %v1047 = vadd.f32 %v976, %v982
      %1048 = vst [vmem:[#allocation3] sm:$0xff] %v984
      %1049 = vst [vmem:[#allocation3 + $0x8] sm:$0xff] %v985
      %1050 = vst [vmem:[#allocation3 + $0x10] sm:$0xff] %v986
      %1051 = vst [vmem:[#allocation3 + $0x18] sm:$0xff] %v987
      %1052 = vst [vmem:[#allocation3 + $0x20] sm:$0xff] %v988
      %1053 = vst [vmem:[#allocation3 + $0x28] sm:$0xff] %v989
      %1054 = vst [vmem:[#allocation3 + $0x30] sm:$0xff] %v990
      %1055 = vst [vmem:[#allocation3 + $0x38] sm:$0xff] %v991
      %1056 = vst [vmem:[#allocation3 + $0x40] sm:$0xff] %v992
      %1057 = vst [vmem:[#allocation3 + $0x48] sm:$0xff] %v993
      %1058 = vst [vmem:[#allocation3 + $0x50] sm:$0xff] %v994
      %1059 = vst [vmem:[#allocation3 + $0x58] sm:$0xff] %v995
      %1060 = vst [vmem:[#allocation3 + $0x60] sm:$0xff] %v996
      %1061 = vst [vmem:[#allocation3 + $0x68] sm:$0xff] %v997
      %1062 = vst [vmem:[#allocation3 + $0x70] sm:$0xff] %v998
      %1063 = vst [vmem:[#allocation3 + $0x78] sm:$0xff] %v999
      %1064 = vst [vmem:[#allocation3 + $0x80] sm:$0xff] %v1000
      %1065 = vst [vmem:[#allocation3 + $0x88] sm:$0xff] %v1001
      %1066 = vst [vmem:[#allocation3 + $0x90] sm:$0xff] %v1002
      %1067 = vst [vmem:[#allocation3 + $0x98] sm:$0xff] %v1003
      %1068 = vst [vmem:[#allocation3 + $0xa0] sm:$0xff] %v1004
      %1069 = vst [vmem:[#allocation3 + $0xa8] sm:$0xff] %v1005
      %1070 = vst [vmem:[#allocation3 + $0xb0] sm:$0xff] %v1006
      %1071 = vst [vmem:[#allocation3 + $0xb8] sm:$0xff] %v1007
      %1072 = vst [vmem:[#allocation3 + $0xc0] sm:$0xff] %v1008
      %1073 = vst [vmem:[#allocation3 + $0xc8] sm:$0xff] %v1009
      %1074 = vst [vmem:[#allocation3 + $0xd0] sm:$0xff] %v1010
      %1075 = vst [vmem:[#allocation3 + $0xd8] sm:$0xff] %v1011
      %1076 = vst [vmem:[#allocation3 + $0xe0] sm:$0xff] %v1012
      %1077 = vst [vmem:[#allocation3 + $0xe8] sm:$0xff] %v1013
      %1078 = vst [vmem:[#allocation3 + $0xf0] sm:$0xff] %v1014
      %1079 = vst [vmem:[#allocation3 + $0xf8] sm:$0xff] %v1015
      %1080 = vst [vmem:[#allocation3 + $0x100] sm:$0xff] %v1016
      %1081 = vst [vmem:[#allocation3 + $0x108] sm:$0xff] %v1017
      %1082 = vst [vmem:[#allocation3 + $0x110] sm:$0xff] %v1018
      %1083 = vst [vmem:[#allocation3 + $0x118] sm:$0xff] %v1019
      %1084 = vst [vmem:[#allocation3 + $0x120] sm:$0xff] %v1020
      %1085 = vst [vmem:[#allocation3 + $0x128] sm:$0xff] %v1021
      %1086 = vst [vmem:[#allocation3 + $0x130] sm:$0xff] %v1022
      %1087 = vst [vmem:[#allocation3 + $0x138] sm:$0xff] %v1023
      %1088 = vst [vmem:[#allocation3 + $0x140] sm:$0xff] %v1024
      %1089 = vst [vmem:[#allocation3 + $0x148] sm:$0xff] %v1025
      %1090 = vst [vmem:[#allocation3 + $0x150] sm:$0xff] %v1026
      %1091 = vst [vmem:[#allocation3 + $0x158] sm:$0xff] %v1027
      %1092 = vst [vmem:[#allocation3 + $0x160] sm:$0xff] %v1028
      %1093 = vst [vmem:[#allocation3 + $0x168] sm:$0xff] %v1029
      %1094 = vst [vmem:[#allocation3 + $0x170] sm:$0xff] %v1030
      %1095 = vst [vmem:[#allocation3 + $0x178] sm:$0xff] %v1031
      %1096 = vst [vmem:[#allocation3 + $0x180] sm:$0xff] %v1032
      %1097 = vst [vmem:[#allocation3 + $0x188] sm:$0xff] %v1033
      %1098 = vst [vmem:[#allocation3 + $0x190] sm:$0xff] %v1034
      %1099 = vst [vmem:[#allocation3 + $0x198] sm:$0xff] %v1035
      %1100 = vst [vmem:[#allocation3 + $0x1a0] sm:$0xff] %v1036
      %1101 = vst [vmem:[#allocation3 + $0x1a8] sm:$0xff] %v1037
      %1102 = vst [vmem:[#allocation3 + $0x1b0] sm:$0xff] %v1038
      %1103 = vst [vmem:[#allocation3 + $0x1b8] sm:$0xff] %v1039
      %1104 = vst [vmem:[#allocation3 + $0x1c0] sm:$0xff] %v1040
      %1105 = vst [vmem:[#allocation3 + $0x1c8] sm:$0xff] %v1041
      %1106 = vst [vmem:[#allocation3 + $0x1d0] sm:$0xff] %v1042
      %1107 = vst [vmem:[#allocation3 + $0x1d8] sm:$0xff] %v1043
      %1108 = vst [vmem:[#allocation3 + $0x1e0] sm:$0xff] %v1044
      %1109 = vst [vmem:[#allocation3 + $0x1e8] sm:$0xff] %v1045
      %1110 = vst [vmem:[#allocation3 + $0x1f0] sm:$0xff] %v1046
      %1111 = vst [vmem:[#allocation3 + $0x1f8] sm:$0xff] %v1047
    $region21: #{tpu_custom_call.1} parent=1 // pred_fallthru
      _
    // Predicated region
    $region22: #{tpu_custom_call.1} parent=1 // pred_check
      _
    $region23: #{tpu_custom_call.1} parent=1 // pred_check_branch
      %1113 = sbr.rel (0) target = $region25
    $region24: #{tpu_custom_call.1} parent=1 // pred_region
      %s1115 = ssub.s32 8192, 8192
      %1116 = vsyncadd [#allocation4], %s1115
      %s1117 = sshll.u32 [#allocation3], 4
      %s1118 = int_to_ptr.vmem [resolvable:$true] %s1117
      %1123 = dma.vmem_to_hbm [thread:$0]  %s1118, 8192, %s3, [#allocation4], 128, 128, 8
    $region25: #{tpu_custom_call.1} parent=1 // pred_fallthru
      _
    // Predicated region
    $region26: #{tpu_custom_call.1} parent=1 // pred_check
      _
    $region27: #{tpu_custom_call.1} parent=1 // pred_check_branch
      %1125 = sbr.rel (0) target = $region29
    $region28: #{tpu_custom_call.1} parent=1 // pred_region
      %1126 = dma.done [#allocation4], 8192
    $region29: #{tpu_custom_call.1} parent=1 // pred_fallthru
      _
    %1127 = vsyncpa [#allocation4], 1

</llo_original>
